<compile_context>
chip_gen: v7x
topology: tpu7x:2x2x1
jax: 0.10.0
libtpu: 0.0.40
codegen_flags: <defaults>
</compile_context>

<pallas_src>
import functools

import jax
import jax.numpy as jnp
from jax.experimental import pallas as pl
from jax.experimental.pallas import tpu as pltpu

MODEL_DIM = 512
HIDDEN = 128
NUM_CLASSES = 2
OUT_PAD = 128          # lane-dense padded output width (multiple of 128)
DEFAULT_BLOCK_ROWS = 1024


def _round_up(x, m):
    return ((x + m - 1) // m) * m


def _mlp_kernel(x_ref, w1_ref, b1_ref, w2_ref, b2_ref, o_ref):
    # fc1 + ReLU: (TN, 512) @ (512, 128) on the MXU, f32 accumulation.
    h = jnp.dot(x_ref[...], w1_ref[...], preferred_element_type=jnp.float32)
    h = jnp.maximum(h + b1_ref[...], 0.0)                 # bias bcast + ReLU on VPU
    # fc2 (padded to 128 output lanes): (TN, 128) @ (128, 128) on the MXU.
    out = jnp.dot(h.astype(w2_ref.dtype), w2_ref[...],
                  preferred_element_type=jnp.float32)
    o_ref[...] = (out + b2_ref[...]).astype(o_ref.dtype)  # lane-dense unmasked store


@functools.partial(jax.jit, static_argnames=("block_rows", "use_bf16"))
def linear_classifier_forward(x, w1, b1, w2, b2, *,
                              block_rows=DEFAULT_BLOCK_ROWS, use_bf16=False):
    """Forward pass. x: any shape whose trailing dims flatten to (N, 512)."""
    x2d = x.reshape(-1, MODEL_DIM)
    n = x2d.shape[0]

    # --- batch tiling: big lane/sublane-aligned tiles, N padded to a tile multiple ---
    tn = min(block_rows, _round_up(n, 8))
    tn = _round_up(tn, 8)
    n_pad = _round_up(n, tn)
    if n_pad != n:
        x2d = jnp.pad(x2d, ((0, n_pad - n), (0, 0)))

    # --- lane-dense output: zero-pad W2/b2 to 128 output lanes (free layout plumbing) ---
    w2_pad = jnp.zeros((HIDDEN, OUT_PAD), w2.dtype).at[:, :NUM_CLASSES].set(w2)
    b2_pad = jnp.zeros((1, OUT_PAD), b2.dtype).at[0, :NUM_CLASSES].set(b2)
    b1_2d = b1.reshape(1, HIDDEN).astype(jnp.float32)
    b2_pad = b2_pad.astype(jnp.float32)

    if use_bf16:
        # HBM-bound kernel: halving x bytes is ~2x on v6e/v7x. f32 accumulation in-kernel.
        x2d = x2d.astype(jnp.bfloat16)
        w1 = w1.astype(jnp.bfloat16)
        w2_pad = w2_pad.astype(jnp.bfloat16)
    else:
        x2d = x2d.astype(jnp.float32)
        w1 = w1.astype(jnp.float32)

    grid = (n_pad // tn,)
    in_bytes = x2d.size * x2d.dtype.itemsize
    w_bytes = (w1.size * w1.dtype.itemsize + w2_pad.size * w2_pad.dtype.itemsize
               + b1_2d.size * 4 + b2_pad.size * 4)
    out_bytes = n_pad * OUT_PAD * 4
    cost = pl.CostEstimate(
        flops=2 * n_pad * MODEL_DIM * HIDDEN + 2 * n_pad * HIDDEN * OUT_PAD,
        transcendentals=0,
        bytes_accessed=in_bytes + w_bytes + out_bytes,
    )

    out_pad = pl.pallas_call(
        _mlp_kernel,
        out_shape=jax.ShapeDtypeStruct((n_pad, OUT_PAD), jnp.float32),
        grid_spec=pltpu.PrefetchScalarGridSpec(
            num_scalar_prefetch=0,
            grid=grid,
            in_specs=[
                # x: tiled over the batch axis -> pipelined prefetch/compute/writeback
                pl.BlockSpec((tn, MODEL_DIM), lambda i: (i, 0)),
                # weights/biases: constant block index -> DMA'd once, resident in VMEM
                pl.BlockSpec((MODEL_DIM, HIDDEN), lambda i: (0, 0)),
                pl.BlockSpec((1, HIDDEN), lambda i: (0, 0)),
                pl.BlockSpec((HIDDEN, OUT_PAD), lambda i: (0, 0)),
                pl.BlockSpec((1, OUT_PAD), lambda i: (0, 0)),
            ],
            out_specs=pl.BlockSpec((tn, OUT_PAD), lambda i: (i, 0)),
        ),
        compiler_params=pltpu.CompilerParams(
            # row-parallel workload: lets v7x shard the grid across its 2 TensorCores
            dimension_semantics=("parallel",),
        ),
        cost_estimate=cost,
    )(x2d, w1, b1_2d, w2_pad, b2_pad)

    # Slice off row padding and the lane padding (free layout plumbing in the wrapper).
    return out_pad[:n, :NUM_CLASSES]


def init_params(key):
    """Deterministic synthetic parameters (torch-Linear-like uniform init)."""
    k1, k2, k3, k4 = jax.random.split(key, 4)
    bound1 = 1.0 / (MODEL_DIM ** 0.5)
    bound2 = 1.0 / (HIDDEN ** 0.5)
    w1 = jax.random.uniform(k1, (MODEL_DIM, HIDDEN), jnp.float32, -bound1, bound1)
    b1 = jax.random.uniform(k2, (HIDDEN,), jnp.float32, -bound1, bound1)
    w2 = jax.random.uniform(k3, (HIDDEN, NUM_CLASSES), jnp.float32, -bound2, bound2)
    b2 = jax.random.uniform(k4, (NUM_CLASSES,), jnp.float32, -bound2, bound2)
    return w1, b1, w2, b2


if __name__ == "__main__":
    key = jax.random.PRNGKey(0)
    k_x, k_p = jax.random.split(key)

    # Small input consistent with x.view(-1, 512): (2, 4, 512) -> (8, 512)
    x = jax.random.normal(k_x, (2, 4, MODEL_DIM), dtype=jnp.float32)
    w1, b1, w2, b2 = init_params(k_p)

    out = linear_classifier_forward(x, w1, b1, w2, b2)
    out = jax.block_until_ready(out)

    # Pure-JAX reference check (f32 path)
    x2d = x.reshape(-1, MODEL_DIM)
    ref = jnp.maximum(x2d @ w1 + b1, 0.0) @ w2 + b2
    assert out.shape == (8, NUM_CLASSES)
    assert jnp.allclose(out, ref, atol=1e-5, rtol=1e-5)

    # Exercise a ragged, multi-tile batch too (N=1000 with block_rows=256 -> padding path)
    x_big = jax.random.normal(k_x, (1000, MODEL_DIM), dtype=jnp.float32)
    out_big = jax.block_until_ready(
        linear_classifier_forward(x_big, w1, b1, w2, b2, block_rows=256))
    ref_big = jnp.maximum(x_big @ w1 + b1, 0.0) @ w2 + b2
    assert out_big.shape == (1000, NUM_CLASSES)
    assert jnp.allclose(out_big, ref_big, atol=1e-5, rtol=1e-5)

    print("KERNEL_OK")
</pallas_src>

<mosaic_0001>
module attributes {stable_mosaic.version = 11 : i64} {
  func.func @_mlp_kernel(%arg0: i32, %arg1: memref<8x512xf32, #tpu.memory_space<vmem>>, %arg2: memref<512x128xf32, #tpu.memory_space<vmem>>, %arg3: memref<1x128xf32, #tpu.memory_space<vmem>>, %arg4: memref<128x128xf32, #tpu.memory_space<vmem>>, %arg5: memref<1x128xf32, #tpu.memory_space<vmem>>, %arg6: memref<8x128xf32, #tpu.memory_space<vmem>>) attributes {dimension_semantics = [#tpu.dimension_semantics<parallel>], iteration_bounds = array<i64: 1>, scalar_prefetch = 0 : i64, scratch_operands = 0 : i64, tpu.core_type = #tpu.core_type<tc>, window_params = [{transform_indices = @transform_0, window_bounds = array<i64: 8, 512>}, {pipeline_mode = #tpu.pipeline_mode<synchronous>, transform_indices = @transform_1, window_bounds = array<i64: 512, 128>}, {pipeline_mode = #tpu.pipeline_mode<synchronous>, transform_indices = @transform_2, window_bounds = array<i64: 1, 128>}, {pipeline_mode = #tpu.pipeline_mode<synchronous>, transform_indices = @transform_3, window_bounds = array<i64: 128, 128>}, {pipeline_mode = #tpu.pipeline_mode<synchronous>, transform_indices = @transform_4, window_bounds = array<i64: 1, 128>}, {transform_indices = @transform_5, window_bounds = array<i64: 8, 128>}]} {
    %c0 = arith.constant 0 : index
    %c0_0 = arith.constant 0 : index
    %0 = vector.load %arg1[%c0, %c0_0] : memref<8x512xf32, #tpu.memory_space<vmem>>, vector<8x512xf32>
    %c0_1 = arith.constant 0 : index
    %c0_2 = arith.constant 0 : index
    %1 = vector.load %arg2[%c0_1, %c0_2] : memref<512x128xf32, #tpu.memory_space<vmem>>, vector<512x128xf32>
    %cst = arith.constant dense<0.000000e+00> : vector<8x128xf32>
    %2 = tpu.matmul %0, %1, %cst {dimension_numbers = #tpu.dot_dimension_numbers<[1], [0], [0], [1], [0, 0, 1, 1], [], []>} : vector<8x512xf32>, vector<512x128xf32>, vector<8x128xf32> -> vector<8x128xf32>
    %c0_3 = arith.constant 0 : index
    %c0_4 = arith.constant 0 : index
    %3 = vector.load %arg3[%c0_3, %c0_4] : memref<1x128xf32, #tpu.memory_space<vmem>>, vector<1x128xf32>
    %4 = vector.broadcast %3 : vector<1x128xf32> to vector<8x128xf32>
    %5 = arith.addf %2, %4 : vector<8x128xf32>
    %cst_5 = arith.constant 0.000000e+00 : f32
    %6 = vector.broadcast %cst_5 : f32 to vector<8x128xf32>
    %7 = arith.maximumf %5, %6 : vector<8x128xf32>
    %c0_6 = arith.constant 0 : index
    %c0_7 = arith.constant 0 : index
    %8 = vector.load %arg4[%c0_6, %c0_7] : memref<128x128xf32, #tpu.memory_space<vmem>>, vector<128x128xf32>
    %cst_8 = arith.constant dense<0.000000e+00> : vector<8x128xf32>
    %9 = tpu.matmul %7, %8, %cst_8 {dimension_numbers = #tpu.dot_dimension_numbers<[1], [0], [0], [1], [0, 0, 1, 1], [], []>} : vector<8x128xf32>, vector<128x128xf32>, vector<8x128xf32> -> vector<8x128xf32>
    %c0_9 = arith.constant 0 : index
    %c0_10 = arith.constant 0 : index
    %10 = vector.load %arg5[%c0_9, %c0_10] : memref<1x128xf32, #tpu.memory_space<vmem>>, vector<1x128xf32>
    %11 = vector.broadcast %10 : vector<1x128xf32> to vector<8x128xf32>
    %12 = arith.addf %9, %11 : vector<8x128xf32>
    %c0_11 = arith.constant 0 : index
    %c0_12 = arith.constant 0 : index
    %13 = vector.load %arg6[%c0_11, %c0_12] : memref<8x128xf32, #tpu.memory_space<vmem>>, vector<8x128xf32>
    tpu.vector_store %arg6[%c0_11, %c0_12], %12 {strides = array<i32>} : memref<8x128xf32, #tpu.memory_space<vmem>>, vector<8x128xf32>,
    return
  }
  func.func @transform_0(%arg0: i32) -> (i32, i32) {
    %c0_i32 = arith.constant 0 : i32
    %c0_i32_0 = arith.constant 0 : i32
    return %arg0, %c0_i32 : i32, i32
  }
  func.func @transform_1(%arg0: i32) -> (i32, i32) {
    %c0_i32 = arith.constant 0 : i32
    %c0_i32_0 = arith.constant 0 : i32
    %c0_i32_1 = arith.constant 0 : i32
    return %c0_i32, %c0_i32_0 : i32, i32
  }
  func.func @transform_2(%arg0: i32) -> (i32, i32) {
    %c0_i32 = arith.constant 0 : i32
    %c0_i32_0 = arith.constant 0 : i32
    %c0_i32_1 = arith.constant 0 : i32
    return %c0_i32, %c0_i32_0 : i32, i32
  }
  func.func @transform_3(%arg0: i32) -> (i32, i32) {
    %c0_i32 = arith.constant 0 : i32
    %c0_i32_0 = arith.constant 0 : i32
    %c0_i32_1 = arith.constant 0 : i32
    return %c0_i32, %c0_i32_0 : i32, i32
  }
  func.func @transform_4(%arg0: i32) -> (i32, i32) {
    %c0_i32 = arith.constant 0 : i32
    %c0_i32_0 = arith.constant 0 : i32
    %c0_i32_1 = arith.constant 0 : i32
    return %c0_i32, %c0_i32_0 : i32, i32
  }
  func.func @transform_5(%arg0: i32) -> (i32, i32) {
    %c0_i32 = arith.constant 0 : i32
    %c0_i32_0 = arith.constant 0 : i32
    return %arg0, %c0_i32 : i32, i32
  }
}

</mosaic_0001>

<llo_original>
// kernel: linear_classifier_forward.1
$region0: #{linear_classifier_forward.1}
  #allocation0 [shape = 'u32[]', space=smem, size = 0x4, offset = 0x4, fixed_abs, tag = 'smem constant byte address 0x4 - core index']
  #allocation1 [shape = 'u32[144,128]{1,0:T(1,128)}', space=vmem, size = 0x12000, scoped, tag = 'internal scratch']
  %s0 = inlined_call_operand.vmem [shape: f32[8,512], index: 0, kind: input, shape index: {}]
  %s1 = inlined_call_operand.vmem [shape: f32[512,128], index: 1, kind: input, shape index: {}]
  %s2 = inlined_call_operand.vmem [shape: f32[1,128], index: 2, kind: input, shape index: {}]
  %s3 = inlined_call_operand.vmem [shape: f32[128,128], index: 3, kind: input, shape index: {}]
  %s4 = inlined_call_operand.vmem [shape: f32[1,128], index: 4, kind: input, shape index: {}]
  %s5 = inlined_call_operand.vmem [shape: f32[8,128], index: 5, kind: output, shape index: {}]
  %s6 = sld [smem:[#allocation0]]
  $region30: #{linear_classifier_forward.1} parent=0
    _
  %s8 = ssub.s32 1, %s6
  %s9 = scalar_select 0, %s8, %s6
  // Predicated region
  $region2: #{linear_classifier_forward.1} parent=0 // pred_check
    _
  $region3: #{linear_classifier_forward.1} parent=0 // pred_check_branch
    %11 = sbr.rel (0) target = $region5
  $region4: #{linear_classifier_forward.1} parent=0 // pred_region
    _
  $region5: #{linear_classifier_forward.1} parent=0 // pred_fallthru
    _
  // Predicated region
  $region6: #{linear_classifier_forward.1} parent=0 // pred_check
    _
  $region7: #{linear_classifier_forward.1} parent=0 // pred_check_branch
    %13 = sbr.rel (0) target = $region9
  $region8: #{linear_classifier_forward.1} parent=0 // pred_region
    _
  $region9: #{linear_classifier_forward.1} parent=0 // pred_fallthru
    _
  // Predicated region
  $region10: #{linear_classifier_forward.1} parent=0 // pred_check
    _
  $region11: #{linear_classifier_forward.1} parent=0 // pred_check_branch
    %15 = sbr.rel (0) target = $region13
  $region12: #{linear_classifier_forward.1} parent=0 // pred_region
    _
  $region13: #{linear_classifier_forward.1} parent=0 // pred_fallthru
    _
  // Predicated region
  $region14: #{linear_classifier_forward.1} parent=0 // pred_check
    _
  $region15: #{linear_classifier_forward.1} parent=0 // pred_check_branch
    %17 = sbr.rel (0) target = $region17
  $region16: #{linear_classifier_forward.1} parent=0 // pred_region
    _
  $region17: #{linear_classifier_forward.1} parent=0 // pred_fallthru
    _
  // Predicated region
  $region18: #{linear_classifier_forward.1} parent=0 // pred_check
    _
  $region19: #{linear_classifier_forward.1} parent=0 // pred_check_branch
    %19 = sbr.rel (0) target = $region21
  $region20: #{linear_classifier_forward.1} parent=0 // pred_region
    _
  $region21: #{linear_classifier_forward.1} parent=0 // pred_fallthru
    _
  %v20 = vld [vmem:[%s0] sm:$0xff]
  %v21 = vld [vmem:[%s0 + $0x8] sm:$0xff]
  %v22 = vld [vmem:[%s0 + $0x10] sm:$0xff]
  %v23 = vld [vmem:[%s0 + $0x18] sm:$0xff]
  %v24 = vld [vmem:[%s1] sm:$0xff]
  %v25 = vld [vmem:[%s1 + $0x8] sm:$0xff]
  %v26 = vld [vmem:[%s1 + $0x10] sm:$0xff]
  %v27 = vld [vmem:[%s1 + $0x18] sm:$0xff]
  %v28 = vld [vmem:[%s1 + $0x20] sm:$0xff]
  %v29 = vld [vmem:[%s1 + $0x28] sm:$0xff]
  %v30 = vld [vmem:[%s1 + $0x30] sm:$0xff]
  %v31 = vld [vmem:[%s1 + $0x38] sm:$0xff]
  %v32 = vld [vmem:[%s1 + $0x40] sm:$0xff]
  %v33 = vld [vmem:[%s1 + $0x48] sm:$0xff]
  %v34 = vld [vmem:[%s1 + $0x50] sm:$0xff]
  %v35 = vld [vmem:[%s1 + $0x58] sm:$0xff]
  %v36 = vld [vmem:[%s1 + $0x60] sm:$0xff]
  %v37 = vld [vmem:[%s1 + $0x68] sm:$0xff]
  %v38 = vld [vmem:[%s1 + $0x70] sm:$0xff]
  %v39 = vld [vmem:[%s1 + $0x78] sm:$0xff]
  %v40 = vld [vmem:[%s1 + $0x80] sm:$0xff]
  %v41 = vld [vmem:[%s1 + $0x88] sm:$0xff]
  %v42 = vld [vmem:[%s1 + $0x90] sm:$0xff]
  %v43 = vld [vmem:[%s1 + $0x98] sm:$0xff]
  %v44 = vld [vmem:[%s1 + $0xa0] sm:$0xff]
  %v45 = vld [vmem:[%s1 + $0xa8] sm:$0xff]
  %v46 = vld [vmem:[%s1 + $0xb0] sm:$0xff]
  %v47 = vld [vmem:[%s1 + $0xb8] sm:$0xff]
  %v48 = vld [vmem:[%s1 + $0xc0] sm:$0xff]
  %v49 = vld [vmem:[%s1 + $0xc8] sm:$0xff]
  %v50 = vld [vmem:[%s1 + $0xd0] sm:$0xff]
  %v51 = vld [vmem:[%s1 + $0xd8] sm:$0xff]
  %v52 = vld [vmem:[%s1 + $0xe0] sm:$0xff]
  %v53 = vld [vmem:[%s1 + $0xe8] sm:$0xff]
  %v54 = vld [vmem:[%s1 + $0xf0] sm:$0xff]
  %v55 = vld [vmem:[%s1 + $0xf8] sm:$0xff]
  %v56 = vld [vmem:[%s1 + $0x100] sm:$0xff]
  %v57 = vld [vmem:[%s1 + $0x108] sm:$0xff]
  %v58 = vld [vmem:[%s1 + $0x110] sm:$0xff]
  %v59 = vld [vmem:[%s1 + $0x118] sm:$0xff]
  %v60 = vld [vmem:[%s1 + $0x120] sm:$0xff]
  %v61 = vld [vmem:[%s1 + $0x128] sm:$0xff]
  %v62 = vld [vmem:[%s1 + $0x130] sm:$0xff]
  %v63 = vld [vmem:[%s1 + $0x138] sm:$0xff]
  %v64 = vld [vmem:[%s1 + $0x140] sm:$0xff]
  %v65 = vld [vmem:[%s1 + $0x148] sm:$0xff]
  %v66 = vld [vmem:[%s1 + $0x150] sm:$0xff]
  %v67 = vld [vmem:[%s1 + $0x158] sm:$0xff]
  %v68 = vld [vmem:[%s1 + $0x160] sm:$0xff]
  %v69 = vld [vmem:[%s1 + $0x168] sm:$0xff]
  %v70 = vld [vmem:[%s1 + $0x170] sm:$0xff]
  %v71 = vld [vmem:[%s1 + $0x178] sm:$0xff]
  %v72 = vld [vmem:[%s1 + $0x180] sm:$0xff]
  %v73 = vld [vmem:[%s1 + $0x188] sm:$0xff]
  %v74 = vld [vmem:[%s1 + $0x190] sm:$0xff]
  %v75 = vld [vmem:[%s1 + $0x198] sm:$0xff]
  %v76 = vld [vmem:[%s1 + $0x1a0] sm:$0xff]
  %v77 = vld [vmem:[%s1 + $0x1a8] sm:$0xff]
  %v78 = vld [vmem:[%s1 + $0x1b0] sm:$0xff]
  %v79 = vld [vmem:[%s1 + $0x1b8] sm:$0xff]
  %v80 = vld [vmem:[%s1 + $0x1c0] sm:$0xff]
  %v81 = vld [vmem:[%s1 + $0x1c8] sm:$0xff]
  %v82 = vld [vmem:[%s1 + $0x1d0] sm:$0xff]
  %v83 = vld [vmem:[%s1 + $0x1d8] sm:$0xff]
  %v84 = vld [vmem:[%s1 + $0x1e0] sm:$0xff]
  %v85 = vld [vmem:[%s1 + $0x1e8] sm:$0xff]
  %v86 = vld [vmem:[%s1 + $0x1f0] sm:$0xff]
  %v87 = vld [vmem:[%s1 + $0x1f8] sm:$0xff]
  %v88 = vld [vmem:[%s2] sm:$0x1]
  %v90 = vlaneseq
  %v91 = vshrl.u32 %v90, 7
  %v92 = vsub.s32 0, %v91
  %v93 = vrot.slane %v88, %v92
  %95 = vmatprep.subr.mxu0 0.0
  %96 = vmatpush1.msra.mxu0 %v24
  %97 = vmatprep.subr.mxu0 0.0
  %98 = vmatpush1.msra.mxu0 %v25
  %99 = vmatprep.subr.mxu0 0.0
  %100 = vmatpush1.msra.mxu0 %v26
  %101 = vmatprep.subr.mxu0 0.0
  %102 = vmatpush1.msra.mxu0 %v27
  %103 = vmatprep.subr.mxu0 0.0
  %104 = vmatpush1.msra.mxu0 %v28
  %105 = vmatprep.subr.mxu0 0.0
  %106 = vmatpush1.msra.mxu0 %v29
  %107 = vmatprep.subr.mxu0 0.0
  %108 = vmatpush1.msra.mxu0 %v30
  %109 = vmatprep.subr.mxu0 0.0
  %110 = vmatpush1.msra.mxu0 %v31
  %111 = vmatprep.subr.mxu0 0.0
  %112 = vmatpush1.msra.mxu0 %v32
  %113 = vmatprep.subr.mxu0 0.0
  %114 = vmatpush1.msra.mxu0 %v33
  %115 = vmatprep.subr.mxu0 0.0
  %116 = vmatpush1.msra.mxu0 %v34
  %117 = vmatprep.subr.mxu0 0.0
  %118 = vmatpush1.msra.mxu0 %v35
  %119 = vmatprep.subr.mxu0 0.0
  %120 = vmatpush1.msra.mxu0 %v36
  %121 = vmatprep.subr.mxu0 0.0
  %122 = vmatpush1.msra.mxu0 %v37
  %123 = vmatprep.subr.mxu0 0.0
  %124 = vmatpush1.msra.mxu0 %v38
  %125 = vmatprep.subr.mxu0 0.0
  %126 = vmatpush1.msra.mxu0 %v39
  %127 = vmatprep.subr.mxu0 0.0
  %128 = vmatpush1.msra.mxu0 %v40
  %129 = vmatprep.subr.mxu0 0.0
  %130 = vmatpush1.msra.mxu0 %v41
  %131 = vmatprep.subr.mxu0 0.0
  %132 = vmatpush1.msra.mxu0 %v42
  %133 = vmatprep.subr.mxu0 0.0
  %134 = vmatpush1.msra.mxu0 %v43
  %135 = vmatprep.subr.mxu0 0.0
  %136 = vmatpush1.msra.mxu0 %v44
  %137 = vmatprep.subr.mxu0 0.0
  %138 = vmatpush1.msra.mxu0 %v45
  %139 = vmatprep.subr.mxu0 0.0
  %140 = vmatpush1.msra.mxu0 %v46
  %141 = vmatprep.subr.mxu0 0.0
  %142 = vmatpush1.msra.mxu0 %v47
  %143 = vmatprep.subr.mxu0 0.0
  %144 = vmatpush1.msra.mxu0 %v48
  %145 = vmatprep.subr.mxu0 0.0
  %146 = vmatpush1.msra.mxu0 %v49
  %147 = vmatprep.subr.mxu0 0.0
  %148 = vmatpush1.msra.mxu0 %v50
  %149 = vmatprep.subr.mxu0 0.0
  %150 = vmatpush1.msra.mxu0 %v51
  %151 = vmatprep.subr.mxu0 0.0
  %152 = vmatpush1.msra.mxu0 %v52
  %153 = vmatprep.subr.mxu0 0.0
  %154 = vmatpush1.msra.mxu0 %v53
  %155 = vmatprep.subr.mxu0 0.0
  %156 = vmatpush1.msra.mxu0 %v54
  %157 = vmatprep.subr.mxu0 0.0
  %158 = vmatpush1.msra.mxu0 %v55
  %159 = vmatprep.mubr.f32.mxu0 %v21
  %160 = vmatmul.mubr.f32.gmra.mrb[0].mxu0 %v20
  %v161 = vpop.f32.mrb[0].mxu0
  %v162 = vadd.f32 %v93, %v161
  %v163 = vpop.f32.mrb[0].mxu0
  %164 = vdwg.mxu0
  %165 = vmatprep.subr.mxu0 0.0
  %166 = vmatpush1.msra.mxu0 %v56
  %167 = vmatprep.subr.mxu0 0.0
  %168 = vmatpush1.msra.mxu0 %v57
  %169 = vmatprep.subr.mxu0 0.0
  %170 = vmatpush1.msra.mxu0 %v58
  %171 = vmatprep.subr.mxu0 0.0
  %172 = vmatpush1.msra.mxu0 %v59
  %173 = vmatprep.subr.mxu0 0.0
  %174 = vmatpush1.msra.mxu0 %v60
  %175 = vmatprep.subr.mxu0 0.0
  %176 = vmatpush1.msra.mxu0 %v61
  %177 = vmatprep.subr.mxu0 0.0
  %178 = vmatpush1.msra.mxu0 %v62
  %179 = vmatprep.subr.mxu0 0.0
  %180 = vmatpush1.msra.mxu0 %v63
  %181 = vmatprep.subr.mxu0 0.0
  %182 = vmatpush1.msra.mxu0 %v64
  %183 = vmatprep.subr.mxu0 0.0
  %184 = vmatpush1.msra.mxu0 %v65
  %185 = vmatprep.subr.mxu0 0.0
  %186 = vmatpush1.msra.mxu0 %v66
  %187 = vmatprep.subr.mxu0 0.0
  %188 = vmatpush1.msra.mxu0 %v67
  %189 = vmatprep.subr.mxu0 0.0
  %190 = vmatpush1.msra.mxu0 %v68
  %191 = vmatprep.subr.mxu0 0.0
  %192 = vmatpush1.msra.mxu0 %v69
  %193 = vmatprep.subr.mxu0 0.0
  %194 = vmatpush1.msra.mxu0 %v70
  %195 = vmatprep.subr.mxu0 0.0
  %196 = vmatpush1.msra.mxu0 %v71
  %197 = vmatprep.subr.mxu0 0.0
  %198 = vmatpush1.msra.mxu0 %v72
  %199 = vmatprep.subr.mxu0 0.0
  %200 = vmatpush1.msra.mxu0 %v73
  %201 = vmatprep.subr.mxu0 0.0
  %202 = vmatpush1.msra.mxu0 %v74
  %203 = vmatprep.subr.mxu0 0.0
  %204 = vmatpush1.msra.mxu0 %v75
  %205 = vmatprep.subr.mxu0 0.0
  %206 = vmatpush1.msra.mxu0 %v76
  %207 = vmatprep.subr.mxu0 0.0
  %208 = vmatpush1.msra.mxu0 %v77
  %209 = vmatprep.subr.mxu0 0.0
  %210 = vmatpush1.msra.mxu0 %v78
  %211 = vmatprep.subr.mxu0 0.0
  %212 = vmatpush1.msra.mxu0 %v79
  %213 = vmatprep.subr.mxu0 0.0
  %214 = vmatpush1.msra.mxu0 %v80
  %215 = vmatprep.subr.mxu0 0.0
  %216 = vmatpush1.msra.mxu0 %v81
  %217 = vmatprep.subr.mxu0 0.0
  %218 = vmatpush1.msra.mxu0 %v82
  %219 = vmatprep.subr.mxu0 0.0
  %220 = vmatpush1.msra.mxu0 %v83
  %221 = vmatprep.subr.mxu0 0.0
  %222 = vmatpush1.msra.mxu0 %v84
  %223 = vmatprep.subr.mxu0 0.0
  %224 = vmatpush1.msra.mxu0 %v85
  %225 = vmatprep.subr.mxu0 0.0
  %226 = vmatpush1.msra.mxu0 %v86
  %227 = vmatprep.subr.mxu0 0.0
  %228 = vmatpush1.msra.mxu0 %v87
  %229 = vmatprep.mubr.f32.mxu0 %v23
  %230 = vmatmul.mubr.f32.gmra.mrb[0].mxu0 %v22
  %v231 = vpop.f32.mrb[0].mxu0
  %v232 = vadd.f32 %v162, %v231
  %v233 = vpop.f32.mrb[0].mxu0
  %234 = vdwg.mxu0
  %v235 = vmax.f32 %v232, 0.0
  %v236 = vld [vmem:[%s3] sm:$0xff]
  %v237 = vld [vmem:[%s3 + $0x8] sm:$0xff]
  %v238 = vld [vmem:[%s3 + $0x10] sm:$0xff]
  %v239 = vld [vmem:[%s3 + $0x18] sm:$0xff]
  %v240 = vld [vmem:[%s3 + $0x20] sm:$0xff]
  %v241 = vld [vmem:[%s3 + $0x28] sm:$0xff]
  %v242 = vld [vmem:[%s3 + $0x30] sm:$0xff]
  %v243 = vld [vmem:[%s3 + $0x38] sm:$0xff]
  %v244 = vld [vmem:[%s3 + $0x40] sm:$0xff]
  %v245 = vld [vmem:[%s3 + $0x48] sm:$0xff]
  %v246 = vld [vmem:[%s3 + $0x50] sm:$0xff]
  %v247 = vld [vmem:[%s3 + $0x58] sm:$0xff]
  %v248 = vld [vmem:[%s3 + $0x60] sm:$0xff]
  %v249 = vld [vmem:[%s3 + $0x68] sm:$0xff]
  %v250 = vld [vmem:[%s3 + $0x70] sm:$0xff]
  %v251 = vld [vmem:[%s3 + $0x78] sm:$0xff]
  %v252 = vld [vmem:[%s4] sm:$0x1]
  %v254 = vlaneseq
  %v255 = vshrl.u32 %v254, 7
  %v256 = vsub.s32 0, %v255
  %v257 = vrot.slane %v252, %v256
  %259 = vmatprep.subr.mxu0 0.0
  %260 = vmatpush1.msra.mxu0 %v236
  %261 = vmatprep.subr.mxu0 0.0
  %262 = vmatpush1.msra.mxu0 %v237
  %263 = vmatprep.subr.mxu0 0.0
  %264 = vmatpush1.msra.mxu0 %v238
  %265 = vmatprep.subr.mxu0 0.0
  %266 = vmatpush1.msra.mxu0 %v239
  %267 = vmatprep.subr.mxu0 0.0
  %268 = vmatpush1.msra.mxu0 %v240
  %269 = vmatprep.subr.mxu0 0.0
  %270 = vmatpush1.msra.mxu0 %v241
  %271 = vmatprep.subr.mxu0 0.0
  %272 = vmatpush1.msra.mxu0 %v242
  %273 = vmatprep.subr.mxu0 0.0
  %274 = vmatpush1.msra.mxu0 %v243
  %275 = vmatprep.subr.mxu0 0.0
  %276 = vmatpush1.msra.mxu0 %v244
  %277 = vmatprep.subr.mxu0 0.0
  %278 = vmatpush1.msra.mxu0 %v245
  %279 = vmatprep.subr.mxu0 0.0
  %280 = vmatpush1.msra.mxu0 %v246
  %281 = vmatprep.subr.mxu0 0.0
  %282 = vmatpush1.msra.mxu0 %v247
  %283 = vmatprep.subr.mxu0 0.0
  %284 = vmatpush1.msra.mxu0 %v248
  %285 = vmatprep.subr.mxu0 0.0
  %286 = vmatpush1.msra.mxu0 %v249
  %287 = vmatprep.subr.mxu0 0.0
  %288 = vmatpush1.msra.mxu0 %v250
  %289 = vmatprep.subr.mxu0 0.0
  %290 = vmatpush1.msra.mxu0 %v251
  %291 = vmatprep.subr.mxu0 0.0
  %292 = vmatpush1.msra.mxu0 0.0
  %293 = vmatprep.subr.mxu0 0.0
  %294 = vmatpush1.msra.mxu0 0.0
  %295 = vmatprep.subr.mxu0 0.0
  %296 = vmatpush1.msra.mxu0 0.0
  %297 = vmatprep.subr.mxu0 0.0
  %298 = vmatpush1.msra.mxu0 0.0
  %299 = vmatprep.subr.mxu0 0.0
  %300 = vmatpush1.msra.mxu0 0.0
  %301 = vmatprep.subr.mxu0 0.0
  %302 = vmatpush1.msra.mxu0 0.0
  %303 = vmatprep.subr.mxu0 0.0
  %304 = vmatpush1.msra.mxu0 0.0
  %305 = vmatprep.subr.mxu0 0.0
  %306 = vmatpush1.msra.mxu0 0.0
  %307 = vmatprep.subr.mxu0 0.0
  %308 = vmatpush1.msra.mxu0 0.0
  %309 = vmatprep.subr.mxu0 0.0
  %310 = vmatpush1.msra.mxu0 0.0
  %311 = vmatprep.subr.mxu0 0.0
  %312 = vmatpush1.msra.mxu0 0.0
  %313 = vmatprep.subr.mxu0 0.0
  %314 = vmatpush1.msra.mxu0 0.0
  %315 = vmatprep.subr.mxu0 0.0
  %316 = vmatpush1.msra.mxu0 0.0
  %317 = vmatprep.subr.mxu0 0.0
  %318 = vmatpush1.msra.mxu0 0.0
  %319 = vmatprep.subr.mxu0 0.0
  %320 = vmatpush1.msra.mxu0 0.0
  %321 = vmatprep.subr.mxu0 0.0
  %322 = vmatpush1.msra.mxu0 0.0
  %323 = vmatprep.mubr.f32.mxu0 0.0
  %324 = vmatmul.mubr.f32.gmra.mrb[0].mxu0 %v235
  %v325 = vpop.f32.mrb[0].mxu0
  %v326 = vadd.f32 %v257, %v325
  %v327 = vpop.f32.mrb[0].mxu0
  %328 = vdwg.mxu0
  %329 = vst [vmem:[%s5] sm:$0xff] %v326
  // Predicated region
  $region22: #{linear_classifier_forward.1} parent=0 // pred_check
    _
  $region23: #{linear_classifier_forward.1} parent=0 // pred_check_branch
    %331 = sbr.rel (0) target = $region25
  $region24: #{linear_classifier_forward.1} parent=0 // pred_region
    _
  $region25: #{linear_classifier_forward.1} parent=0 // pred_fallthru
    _
  // Predicated region
  $region26: #{linear_classifier_forward.1} parent=0 // pred_check
    _
  $region27: #{linear_classifier_forward.1} parent=0 // pred_check_branch
    %333 = sbr.rel (0) target = $region29
  $region28: #{linear_classifier_forward.1} parent=0 // pred_region
    _
  $region29: #{linear_classifier_forward.1} parent=0 // pred_fallthru
    _

</llo_original>
